<compile_context>
chip_gen: v6e
topology: v6e:2x2x1
jax: 0.10.0
libtpu: 0.0.40
codegen_flags: <defaults>
</compile_context>

<pallas_src>
import jax
import jax.numpy as jnp
from jax.experimental import pallas as pl
from jax.experimental.pallas import tpu as pltpu


def _round_up(n, m):
    return ((n + m - 1) // m) * m


def _lane_pad(n):
    # any VMEM-resident 2-D block's last dim is padded to 128 lanes
    return _round_up(max(int(n), 1), 128)


# ----------------------------- kernels -------------------------------------


def _two_layer_kernel(x_ref, w1_ref, b1_ref, w2_ref, b2_ref, out_ref):
    # x:  [TB, 10]   w1: [10, F]   b1: [1, F] (f32)   w2: [F, 10]   b2: [1, 10] (f32)
    w_dtype = w1_ref.dtype
    x = x_ref[...].astype(w_dtype)
    # layer 1: f32 accumulation on the MXU, f32 bias add on the VPU
    h = jnp.dot(x, w1_ref[...], preferred_element_type=jnp.float32) + b1_ref[...]
    # layer 2 (h recast to weight dtype only for the MXU feed)
    out = jnp.dot(h.astype(w_dtype), w2_ref[...],
                  preferred_element_type=jnp.float32) + b2_ref[...]
    out_ref[...] = out.astype(out_ref.dtype)


def _fused_affine_kernel(x_ref, w_ref, b_ref, out_ref):
    # Folded form: x @ (W1@W2) + (b1@W2 + b2); exact in f32 (no activation in between).
    x = x_ref[...].astype(w_ref.dtype)
    out = jnp.dot(x, w_ref[...], preferred_element_type=jnp.float32) + b_ref[...]
    out_ref[...] = out.astype(out_ref.dtype)


# ----------------------------- tile sizing ----------------------------------


def _pick_batch_tile(block_batch, batch, in_f, num_f, out_f,
                     x_bytes, w_bytes, out_bytes, vmem_limit_bytes, fold_layers):
    """Largest batch tile (multiple of 8) whose true VMEM footprint fits the budget.

    Per-row bytes (lane dims padded to 128, sublane dim = tb already a multiple of 8):
      x block (double-buffered)    : 2 * lane_pad(in_f)  * x_bytes
      out block (double-buffered)  : 2 * lane_pad(out_f) * out_bytes
      h intermediate (f32)         :     lane_pad(F)     * 4          (two-layer only)
      h cast copy (weight dtype)   :     lane_pad(F)     * w_bytes    (if weights not f32)
      x cast copy (weight dtype)   :     lane_pad(in_f)  * w_bytes    (if x dtype != weight dtype)
    Weights/biases are a few KiB and are covered by the 40% headroom.
    """
    per_row = 2 * _lane_pad(in_f) * x_bytes + 2 * _lane_pad(out_f) * out_bytes
    if not fold_layers:
        per_row += _lane_pad(num_f) * 4
        if w_bytes != 4:
            per_row += _lane_pad(num_f) * w_bytes
    if x_bytes != w_bytes:
        per_row += _lane_pad(in_f) * w_bytes
    budget = int(vmem_limit_bytes * 0.6)          # headroom for weights / regalloc / temps
    tb_cap = max(8, (budget // per_row) // 8 * 8)
    tb = min(_round_up(block_batch, 8), _round_up(batch, 8), tb_cap)
    return int(tb)


# ----------------------------- wrapper ---------------------------------------


def autocode_forward(x, w1_t, b1, w2_t, b2, *, block_batch=8192, fold_layers=False,
                     out_dtype=None, vmem_limit_bytes=32 * 1024 * 1024):
    """x: [B, 10], w1_t: [10, F], b1: [F], w2_t: [F, 10], b2: [10] -> [B, 10(out_dtype)].

    block_batch:      requested batch tile (rounded to a multiple of 8; automatically
                      capped by the VMEM budget).  ~4K is plenty on v5e (16 MiB scoped
                      default), ~8K on v6e; on v7x pass vmem_limit_bytes=48<<20 to push
                      the tile toward ~16K (physical VMEM is 64 MiB there).
    fold_layers:      fold the two bias-full Linear layers into one [10,10] affine map
                      (exact in f32; bf16-weight numerics differ slightly; must be
                      disabled if an activation is ever inserted between the layers).
    vmem_limit_bytes: scoped VMEM limit passed to Mosaic (safe on all of v5e/v6e/v7x
                      at the 32 MiB default).
    """
    B, in_f = x.shape
    num_f = w1_t.shape[1]
    out_f = w2_t.shape[1]
    w_dtype = w1_t.dtype
    if out_dtype is None:
        out_dtype = x.dtype

    # Narrow (e.g. bf16) weights: stream x in the same dtype — halves x's HBM read and
    # VMEM block.  Accumulation stays f32 on the MXU; bias adds stay f32 on the VPU.
    if w_dtype != jnp.float32 and x.dtype != w_dtype:
        x = x.astype(w_dtype)

    x_bytes = jnp.dtype(x.dtype).itemsize
    w_bytes = jnp.dtype(w_dtype).itemsize
    out_bytes = jnp.dtype(out_dtype).itemsize

    tb = _pick_batch_tile(block_batch, B, in_f, num_f, out_f,
                          x_bytes, w_bytes, out_bytes, vmem_limit_bytes, fold_layers)
    # Partial last tile handled by Pallas boundary masking: OOB rows of the input block
    # are garbage-in, OOB rows of the output block are not written.  No jnp.pad copy.
    grid = (pl.cdiv(B, tb),)

    b1_2d = b1.reshape(1, num_f).astype(jnp.float32)
    b2_2d = b2.reshape(1, out_f).astype(jnp.float32)

    if fold_layers:
        w1_f32 = w1_t.astype(jnp.float32)
        w2_f32 = w2_t.astype(jnp.float32)
        w_eff = (w1_f32 @ w2_f32).astype(w_dtype)          # [10, 10]
        b_eff = b1_2d @ w2_f32 + b2_2d                     # [1, 10], f32
        kernel = _fused_affine_kernel
        operands = (x, w_eff, b_eff)
        in_specs = [
            pl.BlockSpec((tb, in_f), lambda i: (i, 0)),        # streamed batch tile
            pl.BlockSpec((in_f, out_f), lambda i: (0, 0)),     # resident weights
            pl.BlockSpec((1, out_f), lambda i: (0, 0)),        # resident bias
        ]
        flops = 2 * B * in_f * out_f
        weight_bytes = in_f * out_f * w_bytes + out_f * 4
    else:
        kernel = _two_layer_kernel
        operands = (x, w1_t, b1_2d, w2_t, b2_2d)
        in_specs = [
            pl.BlockSpec((tb, in_f), lambda i: (i, 0)),        # streamed batch tile
            pl.BlockSpec((in_f, num_f), lambda i: (0, 0)),     # resident W1^T
            pl.BlockSpec((1, num_f), lambda i: (0, 0)),        # resident b1
            pl.BlockSpec((num_f, out_f), lambda i: (0, 0)),    # resident W2^T
            pl.BlockSpec((1, out_f), lambda i: (0, 0)),        # resident b2
        ]
        flops = 2 * B * (in_f * num_f + num_f * out_f)
        weight_bytes = (in_f * num_f + num_f * out_f) * w_bytes + (num_f + out_f) * 4

    cost = pl.CostEstimate(
        flops=flops,
        transcendentals=0,
        bytes_accessed=B * in_f * x_bytes + B * out_f * out_bytes + weight_bytes,
    )

    out = pl.pallas_call(
        kernel,
        out_shape=jax.ShapeDtypeStruct((B, out_f), out_dtype),
        grid=grid,
        in_specs=in_specs,
        out_specs=pl.BlockSpec((tb, out_f), lambda i: (i, 0)),
        compiler_params=pltpu.CompilerParams(
            # independent batch tiles -> shard across v7x's 2 TensorCores
            dimension_semantics=("parallel",),
            vmem_limit_bytes=vmem_limit_bytes,
        ),
        cost_estimate=cost,
    )(*operands)
    return out


# ----------------------------- params ----------------------------------------


def init_params(key, num_features, param_dtype=jnp.float32):
    """nn.Linear-style U(-1/sqrt(fan_in), 1/sqrt(fan_in)) init.

    Weights stored pre-transposed [in, out] in `param_dtype` (bf16 recommended on
    v6e/v7x); biases always stay f32 (bias adds run in f32 inside the kernel).
    """
    k1, k2, k3, k4 = jax.random.split(key, 4)
    bound1 = 1.0 / jnp.sqrt(10.0)
    bound2 = 1.0 / jnp.sqrt(float(num_features))
    w1_t = jax.random.uniform(k1, (10, num_features), jnp.float32,
                              -bound1, bound1).astype(param_dtype)
    b1 = jax.random.uniform(k2, (num_features,), jnp.float32, -bound1, bound1)
    w2_t = jax.random.uniform(k3, (num_features, 10), jnp.float32,
                              -bound2, bound2).astype(param_dtype)
    b2 = jax.random.uniform(k4, (10,), jnp.float32, -bound2, bound2)
    return w1_t, b1, w2_t, b2


if __name__ == "__main__":
    # TODO(synk): input.requires_grad_(True) in the PyTorch forward is autograd
    # bookkeeping only; it has no effect on the forward math and is not translated.
    key = jax.random.PRNGKey(0)
    kx, kp = jax.random.split(key)

    batch = 257          # deliberately not a multiple of any tile -> partial-last-tile path
    num_features = 32

    x = jax.random.normal(kx, (batch, 10), dtype=jnp.float32)

    # ---- f32 weights, default (large) tile: single tile, exact reference ----
    w1_t, b1, w2_t, b2 = init_params(kp, num_features, param_dtype=jnp.float32)
    ref = (x @ w1_t + b1) @ w2_t + b2

    out = jax.block_until_ready(autocode_forward(x, w1_t, b1, w2_t, b2))
    assert out.shape == (batch, 10)
    assert jnp.allclose(out, ref, atol=1e-5, rtol=1e-5)

    # ---- f32 weights, tiny tile: exercises multi-tile grid + masked partial last tile ----
    out_small = jax.block_until_ready(
        autocode_forward(x, w1_t, b1, w2_t, b2, block_batch=64))
    assert out_small.shape == (batch, 10)
    assert jnp.allclose(out_small, ref, atol=1e-5, rtol=1e-5)

    # ---- folded single-affine path (exact in f32 up to re-association) ----
    out_fold = jax.block_until_ready(
        autocode_forward(x, w1_t, b1, w2_t, b2, fold_layers=True))
    assert out_fold.shape == (batch, 10)
    assert jnp.allclose(out_fold, ref, atol=1e-4, rtol=1e-4)

    # ---- bf16 weights: bf16-streamed x, f32 accumulation + f32 bias adds, f32 output ----
    w1_bf, b1_bf, w2_bf, b2_bf = init_params(kp, num_features, param_dtype=jnp.bfloat16)
    out_bf = jax.block_until_ready(
        autocode_forward(x, w1_bf, b1_bf, w2_bf, b2_bf, block_batch=64))
    h_ref = jnp.dot(x.astype(jnp.bfloat16), w1_bf,
                    preferred_element_type=jnp.float32) + b1_bf
    ref_bf = jnp.dot(h_ref.astype(jnp.bfloat16), w2_bf,
                     preferred_element_type=jnp.float32) + b2_bf
    assert out_bf.shape == (batch, 10)
    assert jnp.allclose(out_bf, ref_bf, atol=1e-2, rtol=1e-2)

    print("KERNEL_OK")
</pallas_src>

<mosaic_0001>
module attributes {stable_mosaic.version = 11 : i64} {
  func.func @_two_layer_kernel(%arg0: i32, %arg1: memref<264x10xf32, #tpu.memory_space<vmem>>, %arg2: memref<10x32xf32, #tpu.memory_space<vmem>>, %arg3: memref<1x32xf32, #tpu.memory_space<vmem>>, %arg4: memref<32x10xf32, #tpu.memory_space<vmem>>, %arg5: memref<1x10xf32, #tpu.memory_space<vmem>>, %arg6: memref<264x10xf32, #tpu.memory_space<vmem>>) attributes {dimension_semantics = [#tpu.dimension_semantics<parallel>], iteration_bounds = array<i64: 1>, scalar_prefetch = 0 : i64, scratch_operands = 0 : i64, tpu.core_type = #tpu.core_type<tc>, window_params = [{transform_indices = @transform_0, window_bounds = array<i64: 264, 10>}, {pipeline_mode = #tpu.pipeline_mode<synchronous>, transform_indices = @transform_1, window_bounds = array<i64: 10, 32>}, {pipeline_mode = #tpu.pipeline_mode<synchronous>, transform_indices = @transform_2, window_bounds = array<i64: 1, 32>}, {pipeline_mode = #tpu.pipeline_mode<synchronous>, transform_indices = @transform_3, window_bounds = array<i64: 32, 10>}, {pipeline_mode = #tpu.pipeline_mode<synchronous>, transform_indices = @transform_4, window_bounds = array<i64: 1, 10>}, {transform_indices = @transform_5, window_bounds = array<i64: 264, 10>}]} {
    %c0 = arith.constant 0 : index
    %c0_0 = arith.constant 0 : index
    %0 = vector.load %arg1[%c0, %c0_0] : memref<264x10xf32, #tpu.memory_space<vmem>>, vector<264x10xf32>
    %c0_1 = arith.constant 0 : index
    %c0_2 = arith.constant 0 : index
    %1 = vector.load %arg2[%c0_1, %c0_2] : memref<10x32xf32, #tpu.memory_space<vmem>>, vector<10x32xf32>
    %cst = arith.constant dense<0.000000e+00> : vector<264x32xf32>
    %2 = tpu.matmul %0, %1, %cst {dimension_numbers = #tpu.dot_dimension_numbers<[1], [0], [0], [1], [0, 0, 1, 1], [], []>} : vector<264x10xf32>, vector<10x32xf32>, vector<264x32xf32> -> vector<264x32xf32>
    %c0_3 = arith.constant 0 : index
    %c0_4 = arith.constant 0 : index
    %3 = vector.load %arg3[%c0_3, %c0_4] : memref<1x32xf32, #tpu.memory_space<vmem>>, vector<1x32xf32>
    %4 = vector.broadcast %3 : vector<1x32xf32> to vector<264x32xf32>
    %5 = arith.addf %2, %4 : vector<264x32xf32>
    %c0_5 = arith.constant 0 : index
    %c0_6 = arith.constant 0 : index
    %6 = vector.load %arg4[%c0_5, %c0_6] : memref<32x10xf32, #tpu.memory_space<vmem>>, vector<32x10xf32>
    %cst_7 = arith.constant dense<0.000000e+00> : vector<264x10xf32>
    %7 = tpu.matmul %5, %6, %cst_7 {dimension_numbers = #tpu.dot_dimension_numbers<[1], [0], [0], [1], [0, 0, 1, 1], [], []>} : vector<264x32xf32>, vector<32x10xf32>, vector<264x10xf32> -> vector<264x10xf32>
    %c0_8 = arith.constant 0 : index
    %c0_9 = arith.constant 0 : index
    %8 = vector.load %arg5[%c0_8, %c0_9] : memref<1x10xf32, #tpu.memory_space<vmem>>, vector<1x10xf32>
    %9 = vector.broadcast %8 : vector<1x10xf32> to vector<264x10xf32>
    %10 = arith.addf %7, %9 : vector<264x10xf32>
    %c0_10 = arith.constant 0 : index
    %c0_11 = arith.constant 0 : index
    %11 = vector.load %arg6[%c0_10, %c0_11] : memref<264x10xf32, #tpu.memory_space<vmem>>, vector<264x10xf32>
    tpu.vector_store %arg6[%c0_10, %c0_11], %10 {strides = array<i32>} : memref<264x10xf32, #tpu.memory_space<vmem>>, vector<264x10xf32>,
    return
  }
  func.func @transform_0(%arg0: i32) -> (i32, i32) {
    %c0_i32 = arith.constant 0 : i32
    %c0_i32_0 = arith.constant 0 : i32
    return %arg0, %c0_i32 : i32, i32
  }
  func.func @transform_1(%arg0: i32) -> (i32, i32) {
    %c0_i32 = arith.constant 0 : i32
    %c0_i32_0 = arith.constant 0 : i32
    %c0_i32_1 = arith.constant 0 : i32
    return %c0_i32, %c0_i32_0 : i32, i32
  }
  func.func @transform_2(%arg0: i32) -> (i32, i32) {
    %c0_i32 = arith.constant 0 : i32
    %c0_i32_0 = arith.constant 0 : i32
    %c0_i32_1 = arith.constant 0 : i32
    return %c0_i32, %c0_i32_0 : i32, i32
  }
  func.func @transform_3(%arg0: i32) -> (i32, i32) {
    %c0_i32 = arith.constant 0 : i32
    %c0_i32_0 = arith.constant 0 : i32
    %c0_i32_1 = arith.constant 0 : i32
    return %c0_i32, %c0_i32_0 : i32, i32
  }
  func.func @transform_4(%arg0: i32) -> (i32, i32) {
    %c0_i32 = arith.constant 0 : i32
    %c0_i32_0 = arith.constant 0 : i32
    %c0_i32_1 = arith.constant 0 : i32
    return %c0_i32, %c0_i32_0 : i32, i32
  }
  func.func @transform_5(%arg0: i32) -> (i32, i32) {
    %c0_i32 = arith.constant 0 : i32
    %c0_i32_0 = arith.constant 0 : i32
    return %arg0, %c0_i32 : i32, i32
  }
}

</mosaic_0001>

<llo_original>
// kernel: tpu_custom_call.1
$region0: #{tpu_custom_call.1}
  #allocation0 [shape = 'u32[]', space=smem, size = 0x4, offset = 0x4, fixed_abs, tag = 'smem constant byte address 0x4 - core index']
  #allocation1 [shape = 'u32[144,128]{1,0:T(1,128)}', space=vmem, size = 0x12000, scoped, tag = 'internal scratch']
  %s0 = inlined_call_operand.vmem [shape: f32[257,10], index: 0, kind: input, shape index: {}]
  %s1 = inlined_call_operand.vmem [shape: f32[10,32], index: 1, kind: input, shape index: {}]
  %s2 = inlined_call_operand.vmem [shape: f32[1,32], index: 2, kind: input, shape index: {}]
  %s3 = inlined_call_operand.vmem [shape: f32[32,10], index: 3, kind: input, shape index: {}]
  %s4 = inlined_call_operand.vmem [shape: f32[1,10], index: 4, kind: input, shape index: {}]
  %s5 = inlined_call_operand.vmem [shape: f32[257,10], index: 5, kind: output, shape index: {}]
  %s6 = sld [smem:[#allocation0]]
  $region30: #{tpu_custom_call.1} parent=0
    _
  %s8 = ssub.s32 1, %s6
  %s9 = scalar_select 0, %s8, %s6
  // Predicated region
  $region2: #{tpu_custom_call.1} parent=0 // pred_check
    _
  $region3: #{tpu_custom_call.1} parent=0 // pred_check_branch
    %11 = sbr.rel (0) target = $region5
  $region4: #{tpu_custom_call.1} parent=0 // pred_region
    _
  $region5: #{tpu_custom_call.1} parent=0 // pred_fallthru
    _
  // Predicated region
  $region6: #{tpu_custom_call.1} parent=0 // pred_check
    _
  $region7: #{tpu_custom_call.1} parent=0 // pred_check_branch
    %13 = sbr.rel (0) target = $region9
  $region8: #{tpu_custom_call.1} parent=0 // pred_region
    _
  $region9: #{tpu_custom_call.1} parent=0 // pred_fallthru
    _
  // Predicated region
  $region10: #{tpu_custom_call.1} parent=0 // pred_check
    _
  $region11: #{tpu_custom_call.1} parent=0 // pred_check_branch
    %15 = sbr.rel (0) target = $region13
  $region12: #{tpu_custom_call.1} parent=0 // pred_region
    _
  $region13: #{tpu_custom_call.1} parent=0 // pred_fallthru
    _
  // Predicated region
  $region14: #{tpu_custom_call.1} parent=0 // pred_check
    _
  $region15: #{tpu_custom_call.1} parent=0 // pred_check_branch
    %17 = sbr.rel (0) target = $region17
  $region16: #{tpu_custom_call.1} parent=0 // pred_region
    _
  $region17: #{tpu_custom_call.1} parent=0 // pred_fallthru
    _
  // Predicated region
  $region18: #{tpu_custom_call.1} parent=0 // pred_check
    _
  $region19: #{tpu_custom_call.1} parent=0 // pred_check_branch
    %19 = sbr.rel (0) target = $region21
  $region20: #{tpu_custom_call.1} parent=0 // pred_region
    _
  $region21: #{tpu_custom_call.1} parent=0 // pred_fallthru
    _
  %v20 = vld [vmem:[%s0] sm:$0xff]
  %v21 = vld [vmem:[%s0 + $0x8] sm:$0xff]
  %v22 = vld [vmem:[%s0 + $0x10] sm:$0xff]
  %v23 = vld [vmem:[%s0 + $0x18] sm:$0xff]
  %v24 = vld [vmem:[%s0 + $0x20] sm:$0xff]
  %v25 = vld [vmem:[%s0 + $0x28] sm:$0xff]
  %v26 = vld [vmem:[%s0 + $0x30] sm:$0xff]
  %v27 = vld [vmem:[%s0 + $0x38] sm:$0xff]
  %v28 = vld [vmem:[%s0 + $0x40] sm:$0xff]
  %v29 = vld [vmem:[%s0 + $0x48] sm:$0xff]
  %v30 = vld [vmem:[%s0 + $0x50] sm:$0xff]
  %v31 = vld [vmem:[%s0 + $0x58] sm:$0xff]
  %v32 = vld [vmem:[%s0 + $0x60] sm:$0xff]
  %v33 = vld [vmem:[%s0 + $0x68] sm:$0xff]
  %v34 = vld [vmem:[%s0 + $0x70] sm:$0xff]
  %v35 = vld [vmem:[%s0 + $0x78] sm:$0xff]
  %v36 = vld [vmem:[%s0 + $0x80] sm:$0xff]
  %v37 = vld [vmem:[%s0 + $0x88] sm:$0xff]
  %v38 = vld [vmem:[%s0 + $0x90] sm:$0xff]
  %v39 = vld [vmem:[%s0 + $0x98] sm:$0xff]
  %v40 = vld [vmem:[%s0 + $0xa0] sm:$0xff]
  %v41 = vld [vmem:[%s0 + $0xa8] sm:$0xff]
  %v42 = vld [vmem:[%s0 + $0xb0] sm:$0xff]
  %v43 = vld [vmem:[%s0 + $0xb8] sm:$0xff]
  %v44 = vld [vmem:[%s0 + $0xc0] sm:$0xff]
  %v45 = vld [vmem:[%s0 + $0xc8] sm:$0xff]
  %v46 = vld [vmem:[%s0 + $0xd0] sm:$0xff]
  %v47 = vld [vmem:[%s0 + $0xd8] sm:$0xff]
  %v48 = vld [vmem:[%s0 + $0xe0] sm:$0xff]
  %v49 = vld [vmem:[%s0 + $0xe8] sm:$0xff]
  %v50 = vld [vmem:[%s0 + $0xf0] sm:$0xff]
  %v51 = vld [vmem:[%s0 + $0xf8] sm:$0xff]
  %v52 = vld [vmem:[%s0 + $0x100] sm:$0xff]
  %v53 = vld [vmem:[%s1] sm:$0xff]
  %v54 = vld [vmem:[%s1 + $0x8] sm:$0x3]
  %v55 = vld [vmem:[%s2] sm:$0x1]
  %v57 = vlaneseq
  %v58 = vshrl.u32 %v57, 7
  %v59 = vsub.s32 0, %v58
  %v60 = vrot.slane %v55, %v59
  %vm62 = vcmask 80896
  %v64 = vsel %vm62, %v20, 0
  %v67 = vsel %vm62, %v21, 0
  %v70 = vsel %vm62, %v22, 0
  %v73 = vsel %vm62, %v23, 0
  %v76 = vsel %vm62, %v24, 0
  %v79 = vsel %vm62, %v25, 0
  %v82 = vsel %vm62, %v26, 0
  %v85 = vsel %vm62, %v27, 0
  %v88 = vsel %vm62, %v28, 0
  %v91 = vsel %vm62, %v29, 0
  %v94 = vsel %vm62, %v30, 0
  %v97 = vsel %vm62, %v31, 0
  %v100 = vsel %vm62, %v32, 0
  %v103 = vsel %vm62, %v33, 0
  %v106 = vsel %vm62, %v34, 0
  %v109 = vsel %vm62, %v35, 0
  %v112 = vsel %vm62, %v36, 0
  %v115 = vsel %vm62, %v37, 0
  %v118 = vsel %vm62, %v38, 0
  %v121 = vsel %vm62, %v39, 0
  %v124 = vsel %vm62, %v40, 0
  %v127 = vsel %vm62, %v41, 0
  %v130 = vsel %vm62, %v42, 0
  %v133 = vsel %vm62, %v43, 0
  %v136 = vsel %vm62, %v44, 0
  %v139 = vsel %vm62, %v45, 0
  %v142 = vsel %vm62, %v46, 0
  %v145 = vsel %vm62, %v47, 0
  %v148 = vsel %vm62, %v48, 0
  %v151 = vsel %vm62, %v49, 0
  %v154 = vsel %vm62, %v50, 0
  %v157 = vsel %vm62, %v51, 0
  %v160 = vsel %vm62, %v52, 0
  %vm162 = vcmask 1041408
  %v164 = vsel %vm162, %v54, 0
  %166 = vmatprep.subr.mxu0 0.0
  %167 = vmatpush1.msra.mxu0 0.0
  %168 = vmatprep.subr.mxu0 0.0
  %169 = vmatpush1.msra.mxu0 0.0
  %170 = vmatprep.subr.mxu0 0.0
  %171 = vmatpush1.msra.mxu0 0.0
  %172 = vmatprep.subr.mxu0 0.0
  %173 = vmatpush1.msra.mxu0 0.0
  %174 = vmatprep.subr.mxu0 0.0
  %175 = vmatpush1.msra.mxu0 0.0
  %176 = vmatprep.subr.mxu0 0.0
  %177 = vmatpush1.msra.mxu0 0.0
  %178 = vmatprep.subr.mxu0 0.0
  %179 = vmatpush1.msra.mxu0 0.0
  %180 = vmatprep.subr.mxu0 0.0
  %181 = vmatpush1.msra.mxu0 0.0
  %182 = vmatprep.subr.mxu0 0.0
  %183 = vmatpush1.msra.mxu0 0.0
  %184 = vmatprep.subr.mxu0 0.0
  %185 = vmatpush1.msra.mxu0 0.0
  %186 = vmatprep.subr.mxu0 0.0
  %187 = vmatpush1.msra.mxu0 0.0
  %188 = vmatprep.subr.mxu0 0.0
  %189 = vmatpush1.msra.mxu0 0.0
  %190 = vmatprep.subr.mxu0 0.0
  %191 = vmatpush1.msra.mxu0 0.0
  %192 = vmatprep.subr.mxu0 0.0
  %193 = vmatpush1.msra.mxu0 0.0
  %194 = vmatprep.subr.mxu0 0.0
  %195 = vmatpush1.msra.mxu0 %v164
  %196 = vmatprep.subr.mxu0 0.0
  %197 = vmatpush1.msra.mxu0 %v53
  %198 = vmatprep.subr.mxu0 0.0
  %199 = vmatpush2.msra.mxu0 0.0
  %200 = vmatprep.subr.mxu0 0.0
  %201 = vmatpush2.msra.mxu0 0.0
  %202 = vmatprep.subr.mxu0 0.0
  %203 = vmatpush2.msra.mxu0 0.0
  %204 = vmatprep.subr.mxu0 0.0
  %205 = vmatpush2.msra.mxu0 0.0
  %206 = vmatprep.subr.mxu0 0.0
  %207 = vmatpush2.msra.mxu0 0.0
  %208 = vmatprep.subr.mxu0 0.0
  %209 = vmatpush2.msra.mxu0 0.0
  %210 = vmatprep.subr.mxu0 0.0
  %211 = vmatpush2.msra.mxu0 0.0
  %212 = vmatprep.subr.mxu0 0.0
  %213 = vmatpush2.msra.mxu0 0.0
  %214 = vmatprep.subr.mxu0 0.0
  %215 = vmatpush2.msra.mxu0 0.0
  %216 = vmatprep.subr.mxu0 0.0
  %217 = vmatpush2.msra.mxu0 0.0
  %218 = vmatprep.subr.mxu0 0.0
  %219 = vmatpush2.msra.mxu0 0.0
  %220 = vmatprep.subr.mxu0 0.0
  %221 = vmatpush2.msra.mxu0 0.0
  %222 = vmatprep.subr.mxu0 0.0
  %223 = vmatpush2.msra.mxu0 0.0
  %224 = vmatprep.subr.mxu0 0.0
  %225 = vmatpush2.msra.mxu0 0.0
  %226 = vmatprep.subr.mxu0 0.0
  %227 = vmatpush2.msra.mxu0 0.0
  %228 = vmatprep.subr.mxu0 0.0
  %229 = vmatpush2.msra.mxu0 0.0
  %230 = vmatprep.mubr.f32.mxu0 0.0
  %231 = vmatmul.mubr.f32.gmra.mxu0 %v64
  %v232 = vpop.f32.mrf.mxu0
  %v233 = vadd.f32 %v60, %v232
  %v234 = vpop.f32.mrf.mxu0
  %235 = vmatprep.mubr.f32.mxu0 0.0
  %236 = vmatmul.mubr.f32.gmra.mxu0 %v67
  %v237 = vpop.f32.mrf.mxu0
  %v238 = vadd.f32 %v60, %v237
  %v239 = vpop.f32.mrf.mxu0
  %240 = vmatprep.mubr.f32.mxu0 0.0
  %241 = vmatmul.mubr.f32.gmra.mxu0 %v70
  %v242 = vpop.f32.mrf.mxu0
  %v243 = vadd.f32 %v60, %v242
  %v244 = vpop.f32.mrf.mxu0
  %245 = vmatprep.mubr.f32.mxu0 0.0
  %246 = vmatmul.mubr.f32.gmra.mxu0 %v73
  %v247 = vpop.f32.mrf.mxu0
  %v248 = vadd.f32 %v60, %v247
  %v249 = vpop.f32.mrf.mxu0
  %250 = vmatprep.mubr.f32.mxu0 0.0
  %251 = vmatmul.mubr.f32.gmra.mxu0 %v76
  %v252 = vpop.f32.mrf.mxu0
  %v253 = vadd.f32 %v60, %v252
  %v254 = vpop.f32.mrf.mxu0
  %255 = vmatprep.mubr.f32.mxu0 0.0
  %256 = vmatmul.mubr.f32.gmra.mxu0 %v79
  %v257 = vpop.f32.mrf.mxu0
  %v258 = vadd.f32 %v60, %v257
  %v259 = vpop.f32.mrf.mxu0
  %260 = vmatprep.mubr.f32.mxu0 0.0
  %261 = vmatmul.mubr.f32.gmra.mxu0 %v82
  %v262 = vpop.f32.mrf.mxu0
  %v263 = vadd.f32 %v60, %v262
  %v264 = vpop.f32.mrf.mxu0
  %265 = vmatprep.mubr.f32.mxu0 0.0
  %266 = vmatmul.mubr.f32.gmra.mxu0 %v85
  %v267 = vpop.f32.mrf.mxu0
  %v268 = vadd.f32 %v60, %v267
  %v269 = vpop.f32.mrf.mxu0
  %270 = vmatprep.mubr.f32.mxu0 0.0
  %271 = vmatmul.mubr.f32.gmra.mxu0 %v88
  %v272 = vpop.f32.mrf.mxu0
  %v273 = vadd.f32 %v60, %v272
  %v274 = vpop.f32.mrf.mxu0
  %275 = vmatprep.mubr.f32.mxu0 0.0
  %276 = vmatmul.mubr.f32.gmra.mxu0 %v91
  %v277 = vpop.f32.mrf.mxu0
  %v278 = vadd.f32 %v60, %v277
  %v279 = vpop.f32.mrf.mxu0
  %280 = vmatprep.mubr.f32.mxu0 0.0
  %281 = vmatmul.mubr.f32.gmra.mxu0 %v94
  %v282 = vpop.f32.mrf.mxu0
  %v283 = vadd.f32 %v60, %v282
  %v284 = vpop.f32.mrf.mxu0
  %285 = vmatprep.mubr.f32.mxu0 0.0
  %286 = vmatmul.mubr.f32.gmra.mxu0 %v97
  %v287 = vpop.f32.mrf.mxu0
  %v288 = vadd.f32 %v60, %v287
  %v289 = vpop.f32.mrf.mxu0
  %290 = vmatprep.mubr.f32.mxu0 0.0
  %291 = vmatmul.mubr.f32.gmra.mxu0 %v100
  %v292 = vpop.f32.mrf.mxu0
  %v293 = vadd.f32 %v60, %v292
  %v294 = vpop.f32.mrf.mxu0
  %295 = vmatprep.mubr.f32.mxu0 0.0
  %296 = vmatmul.mubr.f32.gmra.mxu0 %v103
  %v297 = vpop.f32.mrf.mxu0
  %v298 = vadd.f32 %v60, %v297
  %v299 = vpop.f32.mrf.mxu0
  %300 = vmatprep.mubr.f32.mxu0 0.0
  %301 = vmatmul.mubr.f32.gmra.mxu0 %v106
  %v302 = vpop.f32.mrf.mxu0
  %v303 = vadd.f32 %v60, %v302
  %v304 = vpop.f32.mrf.mxu0
  %305 = vmatprep.mubr.f32.mxu0 0.0
  %306 = vmatmul.mubr.f32.gmra.mxu0 %v109
  %v307 = vpop.f32.mrf.mxu0
  %v308 = vadd.f32 %v60, %v307
  %v309 = vpop.f32.mrf.mxu0
  %310 = vmatprep.mubr.f32.mxu0 0.0
  %311 = vmatmul.mubr.f32.gmra.mxu0 %v112
  %v312 = vpop.f32.mrf.mxu0
  %v313 = vadd.f32 %v60, %v312
  %v314 = vpop.f32.mrf.mxu0
  %315 = vmatprep.mubr.f32.mxu0 0.0
  %316 = vmatmul.mubr.f32.gmra.mxu0 %v115
  %v317 = vpop.f32.mrf.mxu0
  %v318 = vadd.f32 %v60, %v317
  %v319 = vpop.f32.mrf.mxu0
  %320 = vmatprep.mubr.f32.mxu0 0.0
  %321 = vmatmul.mubr.f32.gmra.mxu0 %v118
  %v322 = vpop.f32.mrf.mxu0
  %v323 = vadd.f32 %v60, %v322
  %v324 = vpop.f32.mrf.mxu0
  %325 = vmatprep.mubr.f32.mxu0 0.0
  %326 = vmatmul.mubr.f32.gmra.mxu0 %v121
  %v327 = vpop.f32.mrf.mxu0
  %v328 = vadd.f32 %v60, %v327
  %v329 = vpop.f32.mrf.mxu0
  %330 = vmatprep.mubr.f32.mxu0 0.0
  %331 = vmatmul.mubr.f32.gmra.mxu0 %v124
  %v332 = vpop.f32.mrf.mxu0
  %v333 = vadd.f32 %v60, %v332
  %v334 = vpop.f32.mrf.mxu0
  %335 = vmatprep.mubr.f32.mxu0 0.0
  %336 = vmatmul.mubr.f32.gmra.mxu0 %v127
  %v337 = vpop.f32.mrf.mxu0
  %v338 = vadd.f32 %v60, %v337
  %v339 = vpop.f32.mrf.mxu0
  %340 = vmatprep.mubr.f32.mxu0 0.0
  %341 = vmatmul.mubr.f32.gmra.mxu0 %v130
  %v342 = vpop.f32.mrf.mxu0
  %v343 = vadd.f32 %v60, %v342
  %v344 = vpop.f32.mrf.mxu0
  %345 = vmatprep.mubr.f32.mxu0 0.0
  %346 = vmatmul.mubr.f32.gmra.mxu0 %v133
  %v347 = vpop.f32.mrf.mxu0
  %v348 = vadd.f32 %v60, %v347
  %v349 = vpop.f32.mrf.mxu0
  %350 = vmatprep.mubr.f32.mxu0 0.0
  %351 = vmatmul.mubr.f32.gmra.mxu0 %v136
  %v352 = vpop.f32.mrf.mxu0
  %v353 = vadd.f32 %v60, %v352
  %v354 = vpop.f32.mrf.mxu0
  %355 = vmatprep.mubr.f32.mxu0 0.0
  %356 = vmatmul.mubr.f32.gmra.mxu0 %v139
  %v357 = vpop.f32.mrf.mxu0
  %v358 = vadd.f32 %v60, %v357
  %v359 = vpop.f32.mrf.mxu0
  %360 = vmatprep.mubr.f32.mxu0 0.0
  %361 = vmatmul.mubr.f32.gmra.mxu0 %v142
  %v362 = vpop.f32.mrf.mxu0
  %v363 = vadd.f32 %v60, %v362
  %v364 = vpop.f32.mrf.mxu0
  %365 = vmatprep.mubr.f32.mxu0 0.0
  %366 = vmatmul.mubr.f32.gmra.mxu0 %v145
  %v367 = vpop.f32.mrf.mxu0
  %v368 = vadd.f32 %v60, %v367
  %v369 = vpop.f32.mrf.mxu0
  %370 = vmatprep.mubr.f32.mxu0 0.0
  %371 = vmatmul.mubr.f32.gmra.mxu0 %v148
  %v372 = vpop.f32.mrf.mxu0
  %v373 = vadd.f32 %v60, %v372
  %v374 = vpop.f32.mrf.mxu0
  %375 = vmatprep.mubr.f32.mxu0 0.0
  %376 = vmatmul.mubr.f32.gmra.mxu0 %v151
  %v377 = vpop.f32.mrf.mxu0
  %v378 = vadd.f32 %v60, %v377
  %v379 = vpop.f32.mrf.mxu0
  %380 = vmatprep.mubr.f32.mxu0 0.0
  %381 = vmatmul.mubr.f32.gmra.mxu0 %v154
  %v382 = vpop.f32.mrf.mxu0
  %v383 = vadd.f32 %v60, %v382
  %v384 = vpop.f32.mrf.mxu0
  %385 = vmatprep.mubr.f32.mxu0 0.0
  %386 = vmatmul.mubr.f32.gmra.mxu0 %v157
  %v387 = vpop.f32.mrf.mxu0
  %v388 = vadd.f32 %v60, %v387
  %v389 = vpop.f32.mrf.mxu0
  %390 = vmatprep.mubr.f32.mxu0 0.0
  %391 = vmatmul.mubr.f32.gmra.mxu0 %v160
  %v392 = vpop.f32.mrf.mxu0
  %v393 = vadd.f32 %v60, %v392
  %v394 = vpop.f32.mrf.mxu0
  %395 = vdwg.mxu0
  %v396 = vld [vmem:[%s3] sm:$0xff]
  %v397 = vld [vmem:[%s3 + $0x8] sm:$0xff]
  %v398 = vld [vmem:[%s3 + $0x10] sm:$0xff]
  %v399 = vld [vmem:[%s3 + $0x18] sm:$0xff]
  %v400 = vld [vmem:[%s4] sm:$0x1]
  %v402 = vlaneseq
  %v403 = vshrl.u32 %v402, 7
  %v404 = vsub.s32 0, %v403
  %v405 = vrot.slane %v400, %v404
  %vm407 = vcmask 261120
  %v409 = vsel %vm407, %v233, 0
  %v412 = vsel %vm407, %v238, 0
  %v415 = vsel %vm407, %v243, 0
  %v418 = vsel %vm407, %v248, 0
  %v421 = vsel %vm407, %v253, 0
  %v424 = vsel %vm407, %v258, 0
  %v427 = vsel %vm407, %v263, 0
  %v430 = vsel %vm407, %v268, 0
  %v433 = vsel %vm407, %v273, 0
  %v436 = vsel %vm407, %v278, 0
  %v439 = vsel %vm407, %v283, 0
  %v442 = vsel %vm407, %v288, 0
  %v445 = vsel %vm407, %v293, 0
  %v448 = vsel %vm407, %v298, 0
  %v451 = vsel %vm407, %v303, 0
  %v454 = vsel %vm407, %v308, 0
  %v457 = vsel %vm407, %v313, 0
  %v460 = vsel %vm407, %v318, 0
  %v463 = vsel %vm407, %v323, 0
  %v466 = vsel %vm407, %v328, 0
  %v469 = vsel %vm407, %v333, 0
  %v472 = vsel %vm407, %v338, 0
  %v475 = vsel %vm407, %v343, 0
  %v478 = vsel %vm407, %v348, 0
  %v481 = vsel %vm407, %v353, 0
  %v484 = vsel %vm407, %v358, 0
  %v487 = vsel %vm407, %v363, 0
  %v490 = vsel %vm407, %v368, 0
  %v493 = vsel %vm407, %v373, 0
  %v496 = vsel %vm407, %v378, 0
  %v499 = vsel %vm407, %v383, 0
  %v502 = vsel %vm407, %v388, 0
  %v505 = vsel %vm407, %v393, 0
  %507 = vmatprep.subr.mxu0 0.0
  %508 = vmatpush1.msra.mxu0 0.0
  %509 = vmatprep.subr.mxu0 0.0
  %510 = vmatpush1.msra.mxu0 0.0
  %511 = vmatprep.subr.mxu0 0.0
  %512 = vmatpush1.msra.mxu0 0.0
  %513 = vmatprep.subr.mxu0 0.0
  %514 = vmatpush1.msra.mxu0 0.0
  %515 = vmatprep.subr.mxu0 0.0
  %516 = vmatpush1.msra.mxu0 0.0
  %517 = vmatprep.subr.mxu0 0.0
  %518 = vmatpush1.msra.mxu0 0.0
  %519 = vmatprep.subr.mxu0 0.0
  %520 = vmatpush1.msra.mxu0 0.0
  %521 = vmatprep.subr.mxu0 0.0
  %522 = vmatpush1.msra.mxu0 0.0
  %523 = vmatprep.subr.mxu0 0.0
  %524 = vmatpush1.msra.mxu0 0.0
  %525 = vmatprep.subr.mxu0 0.0
  %526 = vmatpush1.msra.mxu0 0.0
  %527 = vmatprep.subr.mxu0 0.0
  %528 = vmatpush1.msra.mxu0 0.0
  %529 = vmatprep.subr.mxu0 0.0
  %530 = vmatpush1.msra.mxu0 0.0
  %531 = vmatprep.subr.mxu0 0.0
  %532 = vmatpush1.msra.mxu0 %v399
  %533 = vmatprep.subr.mxu0 0.0
  %534 = vmatpush1.msra.mxu0 %v398
  %535 = vmatprep.subr.mxu0 0.0
  %536 = vmatpush1.msra.mxu0 %v397
  %537 = vmatprep.subr.mxu0 0.0
  %538 = vmatpush1.msra.mxu0 %v396
  %539 = vmatprep.subr.mxu0 0.0
  %540 = vmatpush2.msra.mxu0 0.0
  %541 = vmatprep.subr.mxu0 0.0
  %542 = vmatpush2.msra.mxu0 0.0
  %543 = vmatprep.subr.mxu0 0.0
  %544 = vmatpush2.msra.mxu0 0.0
  %545 = vmatprep.subr.mxu0 0.0
  %546 = vmatpush2.msra.mxu0 0.0
  %547 = vmatprep.subr.mxu0 0.0
  %548 = vmatpush2.msra.mxu0 0.0
  %549 = vmatprep.subr.mxu0 0.0
  %550 = vmatpush2.msra.mxu0 0.0
  %551 = vmatprep.subr.mxu0 0.0
  %552 = vmatpush2.msra.mxu0 0.0
  %553 = vmatprep.subr.mxu0 0.0
  %554 = vmatpush2.msra.mxu0 0.0
  %555 = vmatprep.subr.mxu0 0.0
  %556 = vmatpush2.msra.mxu0 0.0
  %557 = vmatprep.subr.mxu0 0.0
  %558 = vmatpush2.msra.mxu0 0.0
  %559 = vmatprep.subr.mxu0 0.0
  %560 = vmatpush2.msra.mxu0 0.0
  %561 = vmatprep.subr.mxu0 0.0
  %562 = vmatpush2.msra.mxu0 0.0
  %563 = vmatprep.subr.mxu0 0.0
  %564 = vmatpush2.msra.mxu0 0.0
  %565 = vmatprep.subr.mxu0 0.0
  %566 = vmatpush2.msra.mxu0 0.0
  %567 = vmatprep.subr.mxu0 0.0
  %568 = vmatpush2.msra.mxu0 0.0
  %569 = vmatprep.subr.mxu0 0.0
  %570 = vmatpush2.msra.mxu0 0.0
  %571 = vmatprep.mubr.f32.mxu0 0.0
  %572 = vmatmul.mubr.f32.gmra.mxu0 %v409
  %v573 = vpop.f32.mrf.mxu0
  %v574 = vadd.f32 %v405, %v573
  %v575 = vpop.f32.mrf.mxu0
  %576 = vmatprep.mubr.f32.mxu0 0.0
  %577 = vmatmul.mubr.f32.gmra.mxu0 %v412
  %v578 = vpop.f32.mrf.mxu0
  %v579 = vadd.f32 %v405, %v578
  %v580 = vpop.f32.mrf.mxu0
  %581 = vmatprep.mubr.f32.mxu0 0.0
  %582 = vmatmul.mubr.f32.gmra.mxu0 %v415
  %v583 = vpop.f32.mrf.mxu0
  %v584 = vadd.f32 %v405, %v583
  %v585 = vpop.f32.mrf.mxu0
  %586 = vmatprep.mubr.f32.mxu0 0.0
  %587 = vmatmul.mubr.f32.gmra.mxu0 %v418
  %v588 = vpop.f32.mrf.mxu0
  %v589 = vadd.f32 %v405, %v588
  %v590 = vpop.f32.mrf.mxu0
  %591 = vmatprep.mubr.f32.mxu0 0.0
  %592 = vmatmul.mubr.f32.gmra.mxu0 %v421
  %v593 = vpop.f32.mrf.mxu0
  %v594 = vadd.f32 %v405, %v593
  %v595 = vpop.f32.mrf.mxu0
  %596 = vmatprep.mubr.f32.mxu0 0.0
  %597 = vmatmul.mubr.f32.gmra.mxu0 %v424
  %v598 = vpop.f32.mrf.mxu0
  %v599 = vadd.f32 %v405, %v598
  %v600 = vpop.f32.mrf.mxu0
  %601 = vmatprep.mubr.f32.mxu0 0.0
  %602 = vmatmul.mubr.f32.gmra.mxu0 %v427
  %v603 = vpop.f32.mrf.mxu0
  %v604 = vadd.f32 %v405, %v603
  %v605 = vpop.f32.mrf.mxu0
  %606 = vmatprep.mubr.f32.mxu0 0.0
  %607 = vmatmul.mubr.f32.gmra.mxu0 %v430
  %v608 = vpop.f32.mrf.mxu0
  %v609 = vadd.f32 %v405, %v608
  %v610 = vpop.f32.mrf.mxu0
  %611 = vmatprep.mubr.f32.mxu0 0.0
  %612 = vmatmul.mubr.f32.gmra.mxu0 %v433
  %v613 = vpop.f32.mrf.mxu0
  %v614 = vadd.f32 %v405, %v613
  %v615 = vpop.f32.mrf.mxu0
  %616 = vmatprep.mubr.f32.mxu0 0.0
  %617 = vmatmul.mubr.f32.gmra.mxu0 %v436
  %v618 = vpop.f32.mrf.mxu0
  %v619 = vadd.f32 %v405, %v618
  %v620 = vpop.f32.mrf.mxu0
  %621 = vmatprep.mubr.f32.mxu0 0.0
  %622 = vmatmul.mubr.f32.gmra.mxu0 %v439
  %v623 = vpop.f32.mrf.mxu0
  %v624 = vadd.f32 %v405, %v623
  %v625 = vpop.f32.mrf.mxu0
  %626 = vmatprep.mubr.f32.mxu0 0.0
  %627 = vmatmul.mubr.f32.gmra.mxu0 %v442
  %v628 = vpop.f32.mrf.mxu0
  %v629 = vadd.f32 %v405, %v628
  %v630 = vpop.f32.mrf.mxu0
  %631 = vmatprep.mubr.f32.mxu0 0.0
  %632 = vmatmul.mubr.f32.gmra.mxu0 %v445
  %v633 = vpop.f32.mrf.mxu0
  %v634 = vadd.f32 %v405, %v633
  %v635 = vpop.f32.mrf.mxu0
  %636 = vmatprep.mubr.f32.mxu0 0.0
  %637 = vmatmul.mubr.f32.gmra.mxu0 %v448
  %v638 = vpop.f32.mrf.mxu0
  %v639 = vadd.f32 %v405, %v638
  %v640 = vpop.f32.mrf.mxu0
  %641 = vmatprep.mubr.f32.mxu0 0.0
  %642 = vmatmul.mubr.f32.gmra.mxu0 %v451
  %v643 = vpop.f32.mrf.mxu0
  %v644 = vadd.f32 %v405, %v643
  %v645 = vpop.f32.mrf.mxu0
  %646 = vmatprep.mubr.f32.mxu0 0.0
  %647 = vmatmul.mubr.f32.gmra.mxu0 %v454
  %v648 = vpop.f32.mrf.mxu0
  %v649 = vadd.f32 %v405, %v648
  %v650 = vpop.f32.mrf.mxu0
  %651 = vmatprep.mubr.f32.mxu0 0.0
  %652 = vmatmul.mubr.f32.gmra.mxu0 %v457
  %v653 = vpop.f32.mrf.mxu0
  %v654 = vadd.f32 %v405, %v653
  %v655 = vpop.f32.mrf.mxu0
  %656 = vmatprep.mubr.f32.mxu0 0.0
  %657 = vmatmul.mubr.f32.gmra.mxu0 %v460
  %v658 = vpop.f32.mrf.mxu0
  %v659 = vadd.f32 %v405, %v658
  %v660 = vpop.f32.mrf.mxu0
  %661 = vmatprep.mubr.f32.mxu0 0.0
  %662 = vmatmul.mubr.f32.gmra.mxu0 %v463
  %v663 = vpop.f32.mrf.mxu0
  %v664 = vadd.f32 %v405, %v663
  %v665 = vpop.f32.mrf.mxu0
  %666 = vmatprep.mubr.f32.mxu0 0.0
  %667 = vmatmul.mubr.f32.gmra.mxu0 %v466
  %v668 = vpop.f32.mrf.mxu0
  %v669 = vadd.f32 %v405, %v668
  %v670 = vpop.f32.mrf.mxu0
  %671 = vmatprep.mubr.f32.mxu0 0.0
  %672 = vmatmul.mubr.f32.gmra.mxu0 %v469
  %v673 = vpop.f32.mrf.mxu0
  %v674 = vadd.f32 %v405, %v673
  %v675 = vpop.f32.mrf.mxu0
  %676 = vmatprep.mubr.f32.mxu0 0.0
  %677 = vmatmul.mubr.f32.gmra.mxu0 %v472
  %v678 = vpop.f32.mrf.mxu0
  %v679 = vadd.f32 %v405, %v678
  %v680 = vpop.f32.mrf.mxu0
  %681 = vmatprep.mubr.f32.mxu0 0.0
  %682 = vmatmul.mubr.f32.gmra.mxu0 %v475
  %v683 = vpop.f32.mrf.mxu0
  %v684 = vadd.f32 %v405, %v683
  %v685 = vpop.f32.mrf.mxu0
  %686 = vmatprep.mubr.f32.mxu0 0.0
  %687 = vmatmul.mubr.f32.gmra.mxu0 %v478
  %v688 = vpop.f32.mrf.mxu0
  %v689 = vadd.f32 %v405, %v688
  %v690 = vpop.f32.mrf.mxu0
  %691 = vmatprep.mubr.f32.mxu0 0.0
  %692 = vmatmul.mubr.f32.gmra.mxu0 %v481
  %v693 = vpop.f32.mrf.mxu0
  %v694 = vadd.f32 %v405, %v693
  %v695 = vpop.f32.mrf.mxu0
  %696 = vmatprep.mubr.f32.mxu0 0.0
  %697 = vmatmul.mubr.f32.gmra.mxu0 %v484
  %v698 = vpop.f32.mrf.mxu0
  %v699 = vadd.f32 %v405, %v698
  %v700 = vpop.f32.mrf.mxu0
  %701 = vmatprep.mubr.f32.mxu0 0.0
  %702 = vmatmul.mubr.f32.gmra.mxu0 %v487
  %v703 = vpop.f32.mrf.mxu0
  %v704 = vadd.f32 %v405, %v703
  %v705 = vpop.f32.mrf.mxu0
  %706 = vmatprep.mubr.f32.mxu0 0.0
  %707 = vmatmul.mubr.f32.gmra.mxu0 %v490
  %v708 = vpop.f32.mrf.mxu0
  %v709 = vadd.f32 %v405, %v708
  %v710 = vpop.f32.mrf.mxu0
  %711 = vmatprep.mubr.f32.mxu0 0.0
  %712 = vmatmul.mubr.f32.gmra.mxu0 %v493
  %v713 = vpop.f32.mrf.mxu0
  %v714 = vadd.f32 %v405, %v713
  %v715 = vpop.f32.mrf.mxu0
  %716 = vmatprep.mubr.f32.mxu0 0.0
  %717 = vmatmul.mubr.f32.gmra.mxu0 %v496
  %v718 = vpop.f32.mrf.mxu0
  %v719 = vadd.f32 %v405, %v718
  %v720 = vpop.f32.mrf.mxu0
  %721 = vmatprep.mubr.f32.mxu0 0.0
  %722 = vmatmul.mubr.f32.gmra.mxu0 %v499
  %v723 = vpop.f32.mrf.mxu0
  %v724 = vadd.f32 %v405, %v723
  %v725 = vpop.f32.mrf.mxu0
  %726 = vmatprep.mubr.f32.mxu0 0.0
  %727 = vmatmul.mubr.f32.gmra.mxu0 %v502
  %v728 = vpop.f32.mrf.mxu0
  %v729 = vadd.f32 %v405, %v728
  %v730 = vpop.f32.mrf.mxu0
  %731 = vmatprep.mubr.f32.mxu0 0.0
  %732 = vmatmul.mubr.f32.gmra.mxu0 %v505
  %v733 = vpop.f32.mrf.mxu0
  %v734 = vadd.f32 %v405, %v733
  %v735 = vpop.f32.mrf.mxu0
  %736 = vdwg.mxu0
  %737 = vst.msk [vmem:[%s5] sm:$0xff] %vm62, %v574
  %738 = vst.msk [vmem:[%s5 + $0x8] sm:$0xff] %vm62, %v579
  %739 = vst.msk [vmem:[%s5 + $0x10] sm:$0xff] %vm62, %v584
  %740 = vst.msk [vmem:[%s5 + $0x18] sm:$0xff] %vm62, %v589
  %741 = vst.msk [vmem:[%s5 + $0x20] sm:$0xff] %vm62, %v594
  %742 = vst.msk [vmem:[%s5 + $0x28] sm:$0xff] %vm62, %v599
  %743 = vst.msk [vmem:[%s5 + $0x30] sm:$0xff] %vm62, %v604
  %744 = vst.msk [vmem:[%s5 + $0x38] sm:$0xff] %vm62, %v609
  %745 = vst.msk [vmem:[%s5 + $0x40] sm:$0xff] %vm62, %v614
  %746 = vst.msk [vmem:[%s5 + $0x48] sm:$0xff] %vm62, %v619
  %747 = vst.msk [vmem:[%s5 + $0x50] sm:$0xff] %vm62, %v624
  %748 = vst.msk [vmem:[%s5 + $0x58] sm:$0xff] %vm62, %v629
  %749 = vst.msk [vmem:[%s5 + $0x60] sm:$0xff] %vm62, %v634
  %750 = vst.msk [vmem:[%s5 + $0x68] sm:$0xff] %vm62, %v639
  %751 = vst.msk [vmem:[%s5 + $0x70] sm:$0xff] %vm62, %v644
  %752 = vst.msk [vmem:[%s5 + $0x78] sm:$0xff] %vm62, %v649
  %753 = vst.msk [vmem:[%s5 + $0x80] sm:$0xff] %vm62, %v654
  %754 = vst.msk [vmem:[%s5 + $0x88] sm:$0xff] %vm62, %v659
  %755 = vst.msk [vmem:[%s5 + $0x90] sm:$0xff] %vm62, %v664
  %756 = vst.msk [vmem:[%s5 + $0x98] sm:$0xff] %vm62, %v669
  %757 = vst.msk [vmem:[%s5 + $0xa0] sm:$0xff] %vm62, %v674
  %758 = vst.msk [vmem:[%s5 + $0xa8] sm:$0xff] %vm62, %v679
  %759 = vst.msk [vmem:[%s5 + $0xb0] sm:$0xff] %vm62, %v684
  %760 = vst.msk [vmem:[%s5 + $0xb8] sm:$0xff] %vm62, %v689
  %761 = vst.msk [vmem:[%s5 + $0xc0] sm:$0xff] %vm62, %v694
  %762 = vst.msk [vmem:[%s5 + $0xc8] sm:$0xff] %vm62, %v699
  %763 = vst.msk [vmem:[%s5 + $0xd0] sm:$0xff] %vm62, %v704
  %764 = vst.msk [vmem:[%s5 + $0xd8] sm:$0xff] %vm62, %v709
  %765 = vst.msk [vmem:[%s5 + $0xe0] sm:$0xff] %vm62, %v714
  %766 = vst.msk [vmem:[%s5 + $0xe8] sm:$0xff] %vm62, %v719
  %767 = vst.msk [vmem:[%s5 + $0xf0] sm:$0xff] %vm62, %v724
  %768 = vst.msk [vmem:[%s5 + $0xf8] sm:$0xff] %vm62, %v729
  %769 = vst.msk [vmem:[%s5 + $0x100] sm:$0xff] %vm62, %v734
  // Predicated region
  $region22: #{tpu_custom_call.1} parent=0 // pred_check
    _
  $region23: #{tpu_custom_call.1} parent=0 // pred_check_branch
    %771 = sbr.rel (0) target = $region25
  $region24: #{tpu_custom_call.1} parent=0 // pred_region
    _
  $region25: #{tpu_custom_call.1} parent=0 // pred_fallthru
    _
  // Predicated region
  $region26: #{tpu_custom_call.1} parent=0 // pred_check
    _
  $region27: #{tpu_custom_call.1} parent=0 // pred_check_branch
    %773 = sbr.rel (0) target = $region29
  $region28: #{tpu_custom_call.1} parent=0 // pred_region
    _
  $region29: #{tpu_custom_call.1} parent=0 // pred_fallthru
    _

</llo_original>
